<compile_context>
chip_gen: v7x
topology: tpu7x:2x2x1
jax: 0.10.0
libtpu: 0.0.40
codegen_flags: <defaults>
</compile_context>

<pallas_src>
import jax
import jax.numpy as jnp
from jax.experimental import pallas as pl
from jax.experimental.pallas import tpu as pltpu


def _copy_kernel(x_ref, o_ref):
    # Pure passthrough: copy the current tile (vld -> vst, no VALU work).
    o_ref[...] = x_ref[...]


# Per-tile byte budget.  Input and output tiles are each double-buffered by
# the BlockSpec pipeline (4 live buffers), so 4 * _TILE_BYTES ~= 8 MiB stays
# well inside even v5e's 16 MiB default scoped-VMEM limit, while >=1 MiB tiles
# reach ~85% of the HBM copy roofline.
_TILE_BYTES = 2 * 1024 * 1024


def _pick_lanes(n: int) -> int:
    """Largest lane width (multiple of 128, capped) that divides n."""
    for lanes in (8192, 4096, 2048, 1024, 512, 256, 128):
        if n % lanes == 0:
            return lanes
    return 0  # not divisible by 128 -> single full-array block fallback


def identity_map(x: jax.Array) -> jax.Array:
    """Pallas implementation of IdentityMap.forward: returns x unchanged."""
    orig_shape = x.shape
    n = x.size
    itemsize = jnp.dtype(x.dtype).itemsize

    lanes = _pick_lanes(n)
    if lanes == 0:
        # Degenerate / non-128-divisible sizes: one block covering the whole
        # (flattened) array — block_shape == full array dims is always legal.
        rows, lanes = 1, n
        block_rows = 1
    else:
        rows = n // lanes
        # Rows per tile: hit the byte budget with a multiple-of-8 sublane count.
        block_rows = max(8, (_TILE_BYTES // (lanes * itemsize)) // 8 * 8)
        if block_rows >= rows:
            block_rows = rows  # full dim -> always legal, single grid step

    x2d = x.reshape(rows, lanes)
    block = (block_rows, lanes)
    grid = (pl.cdiv(rows, block_rows),)

    out2d = pl.pallas_call(
        _copy_kernel,
        out_shape=jax.ShapeDtypeStruct((rows, lanes), x.dtype),
        grid_spec=pltpu.PrefetchScalarGridSpec(
            num_scalar_prefetch=0,
            grid=grid,
            in_specs=[pl.BlockSpec(block, lambda i: (i, 0))],
            out_specs=pl.BlockSpec(block, lambda i: (i, 0)),
        ),
        # Output buffer aliases the input buffer: no extra HBM allocation when
        # the input is donatable (and still correct when it is not).
        input_output_aliases={0: 0},
        compiler_params=pltpu.CompilerParams(
            dimension_semantics=("parallel",),  # shard row tiles across TCs on v7x
        ),
        cost_estimate=pl.CostEstimate(
            flops=0,
            transcendentals=0,
            bytes_accessed=2 * n * itemsize,
        ),
    )(x2d)

    return out2d.reshape(orig_shape)


# The module's `config` property (metadata only, not part of the forward compute).
IDENTITY_MAP_CONFIG = {"mm_projector_type": "identity"}


if __name__ == "__main__":
    key = jax.random.PRNGKey(0)

    # Small projector-like input: batch=2, seq=8, hidden=32.
    x = jax.random.normal(key, (2, 8, 32), dtype=jnp.float32)
    expected = jax.random.normal(key, (2, 8, 32), dtype=jnp.float32)  # same key -> identical

    y = identity_map(x)
    jax.block_until_ready(y)
    assert y.shape == expected.shape
    assert y.dtype == expected.dtype
    assert bool(jnp.array_equal(y, expected))

    # A second, larger lane-dense case that exercises the tiled path
    # (grid with more than one step) and a non-f32 dtype.
    x2 = jax.random.normal(jax.random.PRNGKey(0), (8, 128, 1024), dtype=jnp.float32)
    y2 = identity_map(x2)
    jax.block_until_ready(y2)
    assert y2.shape == x2.shape and y2.dtype == x2.dtype
    assert bool(jnp.array_equal(y2, x2))

    x3 = jax.random.normal(jax.random.PRNGKey(1), (4, 256, 512), dtype=jnp.bfloat16)
    y3 = identity_map(x3)
    jax.block_until_ready(y3)
    assert y3.shape == x3.shape and y3.dtype == x3.dtype
    assert bool(jnp.array_equal(y3, x3))

    # Odd-sized (non-128-divisible) fallback path.
    x4 = jax.random.normal(jax.random.PRNGKey(2), (3, 7, 5), dtype=jnp.float32)
    y4 = identity_map(x4)
    jax.block_until_ready(y4)
    assert y4.shape == x4.shape and bool(jnp.array_equal(y4, x4))

    print("KERNEL_OK")
</pallas_src>

<mosaic_0001>
module attributes {stable_mosaic.version = 11 : i64} {
  func.func @_copy_kernel(%arg0: i32, %arg1: memref<1x512xf32, #tpu.memory_space<vmem>>, %arg2: memref<1x512xf32, #tpu.memory_space<vmem>>) attributes {dimension_semantics = [#tpu.dimension_semantics<parallel>], iteration_bounds = array<i64: 1>, scalar_prefetch = 0 : i64, scratch_operands = 0 : i64, tpu.core_type = #tpu.core_type<tc>, window_params = [{transform_indices = @transform_0, window_bounds = array<i64: 1, 512>}, {transform_indices = @transform_1, window_bounds = array<i64: 1, 512>}]} {
    %c0 = arith.constant 0 : index
    %c0_0 = arith.constant 0 : index
    %0 = vector.load %arg1[%c0, %c0_0] : memref<1x512xf32, #tpu.memory_space<vmem>>, vector<1x512xf32>
    %c0_1 = arith.constant 0 : index
    %c0_2 = arith.constant 0 : index
    %1 = vector.load %arg2[%c0_1, %c0_2] : memref<1x512xf32, #tpu.memory_space<vmem>>, vector<1x512xf32>
    tpu.vector_store %arg2[%c0_1, %c0_2], %0 {strides = array<i32>} : memref<1x512xf32, #tpu.memory_space<vmem>>, vector<1x512xf32>,
    return
  }
  func.func @transform_0(%arg0: i32) -> (i32, i32) {
    %c0_i32 = arith.constant 0 : i32
    %c0_i32_0 = arith.constant 0 : i32
    return %arg0, %c0_i32 : i32, i32
  }
  func.func @transform_1(%arg0: i32) -> (i32, i32) {
    %c0_i32 = arith.constant 0 : i32
    %c0_i32_0 = arith.constant 0 : i32
    return %arg0, %c0_i32 : i32, i32
  }
}

</mosaic_0001>

<llo_original>
// kernel: tpu_custom_call.1
$region0: #{tpu_custom_call.1}
  #allocation0 [shape = 'u32[]', space=smem, size = 0x4, offset = 0x4, fixed_abs, tag = 'smem constant byte address 0x4 - core index']
  #allocation1 [shape = 'u32[144,128]{1,0:T(1,128)}', space=vmem, size = 0x12000, scoped, tag = 'internal scratch']
  %s0 = inlined_call_operand.hbm [shape: f32[1,512], index: 0, kind: input, shape index: {}, may-alias: {0,1}]
  %s1 = inlined_call_operand.hbm [shape: f32[1,512], index: 1, kind: output, shape index: {}, may-alias: {0,1}]
  %s2 = sld [smem:[#allocation0]]
  $region18: #{tpu_custom_call.1} parent=0
    _
  %s4 = ssub.s32 1, %s2
  %s5 = scalar_select 0, %s4, %s2
  $region1: #{tpu_custom_call.1} parent=0
    #allocation2 [shape = 'u8[2048]{0}', space=vmem, size = 0x800, scoped, tag = 'input window, operand 0, single buffered']
    #allocation3 [shape = 's32[1]{0}', space=sflag, size = 0x4, scoped, tag = 'scoped memory for tpu_custom_call.1']
    #allocation4 [shape = 's32[1]{0}', space=sflag, size = 0x4, scoped, tag = 'scoped memory for tpu_custom_call.1']
    #allocation5 [shape = 'u8[2048]{0}', space=vmem, size = 0x800, scoped, tag = 'output window, operand 0, single buffered']
    %6 = vsyncpa [#allocation3], 0
    %7 = vsyncpa [#allocation4], 0
    // Predicated region
    $region2: #{tpu_custom_call.1} parent=1 // pred_check
      _
    $region3: #{tpu_custom_call.1} parent=1 // pred_check_branch
      %9 = sbr.rel (0) target = $region5
    $region4: #{tpu_custom_call.1} parent=1 // pred_region
      %s11 = ssub.s32 64, 64
      %12 = vsyncadd [#allocation3], %s11
      %s14 = sshll.u32 [#allocation2], 4
      %s15 = int_to_ptr.vmem [resolvable:$true] %s14
      %17 = dma.hbm_to_vmem [thread:$0]  %s0, 64, %s15, [#allocation3]
    $region5: #{tpu_custom_call.1} parent=1 // pred_fallthru
      _
    // Predicated region
    $region6: #{tpu_custom_call.1} parent=1 // pred_check
      _
    $region7: #{tpu_custom_call.1} parent=1 // pred_check_branch
      %19 = sbr.rel (0) target = $region9
    $region8: #{tpu_custom_call.1} parent=1 // pred_region
      %20 = dma.done [#allocation3], 64
    $region9: #{tpu_custom_call.1} parent=1 // pred_fallthru
      _
    %v21 = vld [vmem:[#allocation2] sm:$0xf]
    %v22 = vlaneseq
    %vm23 = vcmp.ge.s32.totalorder %v22, 0
    %vm24 = vcmp.lt.s32.totalorder %v22, 512
    %vm25 = vmand %vm23, %vm24
    %26 = vst.msk [vmem:[#allocation5] sm:$0xf] %vm25, %v21
    // Predicated region
    $region10: #{tpu_custom_call.1} parent=1 // pred_check
      _
    $region11: #{tpu_custom_call.1} parent=1 // pred_check_branch
      %28 = sbr.rel (0) target = $region13
    $region12: #{tpu_custom_call.1} parent=1 // pred_region
      %s30 = ssub.s32 64, 64
      %31 = vsyncadd [#allocation4], %s30
      %s33 = sshll.u32 [#allocation5], 4
      %s34 = int_to_ptr.vmem [resolvable:$true] %s33
      %36 = dma.vmem_to_hbm [thread:$0]  %s34, 64, %s1, [#allocation4]
    $region13: #{tpu_custom_call.1} parent=1 // pred_fallthru
      _
    // Predicated region
    $region14: #{tpu_custom_call.1} parent=1 // pred_check
      _
    $region15: #{tpu_custom_call.1} parent=1 // pred_check_branch
      %38 = sbr.rel (0) target = $region17
    $region16: #{tpu_custom_call.1} parent=1 // pred_region
      %39 = dma.done [#allocation4], 64
    $region17: #{tpu_custom_call.1} parent=1 // pred_fallthru
      _
    %40 = vsyncpa [#allocation3], 1
    %41 = vsyncpa [#allocation4], 1

</llo_original>
